<compile_context>
chip_gen: v7x
topology: tpu7x:2x2x1
jax: 0.10.0
libtpu: 0.0.40
codegen_flags: <defaults>
</compile_context>

<pallas_src>
import jax
import jax.numpy as jnp
from jax.experimental import pallas as pl
from jax.experimental.pallas import tpu as pltpu

INIT_BETA = 0.1   # init_val in BetaNetwork.__init__


# ---- Pallas kernel: return the beta parameter --------------------------------
def beta_kernel(beta_ref, out_ref):
    # beta_ref: (1,) float32 in SMEM (the learnable parameter)
    # out_ref : (1,) float32 in SMEM (the forward result)
    out_ref[0] = beta_ref[0]


def beta_network_forward(x, beta):
    """Mirrors BetaNetwork.forward(x): ignores x, returns the scalar beta."""
    del x  # the reference module does not use x for its output
    beta_1d = jnp.asarray(beta, jnp.float32).reshape(1)
    out = pl.pallas_call(
        beta_kernel,
        out_shape=jax.ShapeDtypeStruct((1,), jnp.float32),
        in_specs=[pl.BlockSpec(memory_space=pltpu.MemorySpace.SMEM)],
        out_specs=pl.BlockSpec(memory_space=pltpu.MemorySpace.SMEM),
    )(beta_1d)
    return out[0]   # 0-d scalar, like the PyTorch Parameter returned by forward


if __name__ == "__main__":
    key = jax.random.PRNGKey(0)

    # Learnable parameter (as registered in __init__).
    beta = jnp.float32(INIT_BETA)

    # Small example input; forward accepts it but does not use it.
    x = jax.random.normal(key, (2, 4, 16), jnp.float32)

    out = beta_network_forward(x, beta)
    jax.block_until_ready(out)

    assert out.shape == ()
    assert out.dtype == jnp.float32
    assert abs(float(out) - float(jnp.float32(INIT_BETA))) < 1e-6
    print("KERNEL_OK")
</pallas_src>

<mosaic_0001>
module attributes {stable_mosaic.version = 11 : i64} {
  func.func @beta_kernel(%arg0: memref<1xf32, #tpu.memory_space<smem>>, %arg1: memref<1xf32, #tpu.memory_space<smem>>) attributes {dimension_semantics = [], scalar_prefetch = 0 : i64, scratch_operands = 0 : i64, tpu.core_type = #tpu.core_type<tc>} {
    %c0 = arith.constant 0 : index
    %0 = memref.load %arg0[%c0] : memref<1xf32, #tpu.memory_space<smem>>
    %c0_0 = arith.constant 0 : index
    %1 = memref.load %arg1[%c0_0] : memref<1xf32, #tpu.memory_space<smem>>
    memref.store %0, %arg1[%c0_0] : memref<1xf32, #tpu.memory_space<smem>>
    return
  }
}

</mosaic_0001>

<llo_original>
// kernel: tpu_custom_call.1
$region0: #{tpu_custom_call.1}
  #allocation0 [shape = 'u32[]', space=smem, size = 0x4, offset = 0x4, fixed_abs, tag = 'smem constant byte address 0x4 - core index']
  #allocation1 [shape = 'u32[144,128]{1,0:T(1,128)}', space=vmem, size = 0x12000, scoped, tag = 'internal scratch']
  #allocation2 [shape = 'f32[1]{0:T(128)S(6)}', space=smem, size = 0x200, scoped, tag = 'scoped memory for tpu_custom_call.1']
  %s0 = inlined_call_operand.<no memory space> [shape: f32[1], index: 0, kind: input, shape index: {}]
  %s1 = inlined_call_operand.hbm [shape: f32[1], index: 1, kind: output, shape index: {}]
  %s2 = sld [smem:[#allocation0]]
  $region14: #{tpu_custom_call.1} parent=0
    _
  %s4 = ssub.s32 1, %s2
  %s5 = scalar_select 0, %s4, %s2
  %6 = sst [smem:[#allocation2]] %s0
  $region1: #{tpu_custom_call.1} parent=0
    #allocation3 [shape = 'u8[512]{0}', space=smem, size = 0x200, scoped, tag = 'output window, operand 0, single buffered']
    #allocation4 [shape = 's32[1]{0}', space=sflag, size = 0x4, scoped, tag = 'scoped memory for tpu_custom_call.1']
    %7 = vsyncpa [#allocation4], 0
    // Predicated region
    $region2: #{tpu_custom_call.1} parent=1 // pred_check
      _
    $region3: #{tpu_custom_call.1} parent=1 // pred_check_branch
      %9 = sbr.rel (0) target = $region5
    $region4: #{tpu_custom_call.1} parent=1 // pred_region
      _
    $region5: #{tpu_custom_call.1} parent=1 // pred_fallthru
      _
    %s10 = sld [smem:[#allocation2]]
    %s11 = scalar_lea.smem [#allocation3], 0
    %12 = sst [smem:[%s11]] %s10
    // Predicated region
    $region6: #{tpu_custom_call.1} parent=1 // pred_check
      _
    $region7: #{tpu_custom_call.1} parent=1 // pred_check_branch
      %14 = sbr.rel (0) target = $region9
    $region8: #{tpu_custom_call.1} parent=1 // pred_region
      %s16 = ssub.s32 16, 16
      %17 = vsyncadd [#allocation4], %s16
      %20 = dma.smem_to_hbm [#allocation3], 16, %s1, [#allocation4]
    $region9: #{tpu_custom_call.1} parent=1 // pred_fallthru
      _
    // Predicated region
    $region10: #{tpu_custom_call.1} parent=1 // pred_check
      _
    $region11: #{tpu_custom_call.1} parent=1 // pred_check_branch
      %22 = sbr.rel (0) target = $region13
    $region12: #{tpu_custom_call.1} parent=1 // pred_region
      %23 = dma.done [#allocation4], 16
    $region13: #{tpu_custom_call.1} parent=1 // pred_fallthru
      _
    %24 = sfence
    %25 = vsyncpa [#allocation4], 1

</llo_original>
